<compile_context>
chip_gen: v5e
topology: v5e:2x2
jax: 0.10.0
libtpu: 0.0.40
codegen_flags: <defaults>
</compile_context>

<pallas_src>
import functools

import jax
import jax.numpy as jnp
from jax import lax
from jax.experimental import pallas as pl
from jax.experimental.pallas import tpu as pltpu


# ----------------------------------------------------------------------------
# One-time parameter packing (hoisted out of the per-step hot path).
# ----------------------------------------------------------------------------
def pack_lsthm_params(params, weight_dtype=None):
    """Pack PyTorch-convention LSTHM params for the Pallas kernels.

    params: W_w (4C, in), W_b (4C,), U_w (4C, C), U_b (4C,), V_w (4C, hy), V_b (4C,)
            (nn.Linear convention: weight is (out_features, in_features)).
    Returns:
      w_xz: (in + hy, 4C)  pre-transposed, input order [x | z]  (recurrence-free part)
      w_u : (C, 4C)        pre-transposed recurrent weight
      b_cat: (1, 4C) float32   W_b + U_b + V_b (kept in f32 for accuracy)
    """
    w_xz = jnp.concatenate(
        [jnp.asarray(params["W_w"]).T, jnp.asarray(params["V_w"]).T], axis=0)
    w_u = jnp.asarray(params["U_w"]).T
    if weight_dtype is not None:  # e.g. jnp.bfloat16 on v6e/v7x (cast acts too!)
        w_xz = w_xz.astype(weight_dtype)
        w_u = w_u.astype(weight_dtype)
    b_cat = (jnp.asarray(params["W_b"], jnp.float32)
             + jnp.asarray(params["U_b"], jnp.float32)
             + jnp.asarray(params["V_b"], jnp.float32)).reshape(1, -1)
    return {"w_xz": w_xz, "w_u": w_u, "b_cat": b_cat}


# ----------------------------------------------------------------------------
# Single-step cell kernel (fallback path; prefer lsthm_sequence for sequences).
# ----------------------------------------------------------------------------
def _lsthm_cell_kernel(cell_size,
                       xz_ref, h_ref, c_ref, wxz_ref, wu_ref, b_ref,
                       c_out_ref, h_out_ref):
    cs = cell_size
    w_xz = wxz_ref[...]
    w_u = wu_ref[...]

    # Two MXU matmuls (no in-kernel lane concatenation), f32 accumulation,
    # then a single f32 bias add.
    sums = (jnp.dot(xz_ref[...].astype(w_xz.dtype), w_xz,
                    preferred_element_type=jnp.float32)
            + jnp.dot(h_ref[...].astype(w_u.dtype), w_u,
                      preferred_element_type=jnp.float32)
            + b_ref[...])

    # Transcendentals only where needed: sigmoid over [f|i|o] (3C lanes),
    # tanh over the candidate (C lanes).
    sig = jax.nn.sigmoid(sums[:, :3 * cs])
    ch_t = jnp.tanh(sums[:, 3 * cs:])

    f_t = sig[:, 0 * cs:1 * cs]
    i_t = sig[:, 1 * cs:2 * cs]
    o_t = sig[:, 2 * cs:3 * cs]

    c_t = f_t * c_ref[...].astype(jnp.float32) + i_t * ch_t
    h_t = jnp.tanh(c_t) * o_t

    c_out_ref[...] = c_t.astype(c_out_ref.dtype)
    h_out_ref[...] = h_t.astype(h_out_ref.dtype)


def lsthm_cell(x, c, h, z, packed, cell_size):
    """Pallas-backed LSTHMCell forward (single step).

    x: (B, in_size), c: (B, C), h: (B, C), z: (B, hybrid_in_size)
    packed: output of pack_lsthm_params.
    Returns (c_t, h_t), each (B, C).
    NOTE: c and h are aliased into the outputs (in-place state update); the
    caller should not rely on those buffers after the call.
    """
    B = x.shape[0]
    dtype = c.dtype
    # Recurrence-independent concat done once in the wrapper by XLA (cheap),
    # so the kernel never lane-concatenates non-aligned segments.
    xz = jnp.concatenate([x, z], axis=1)

    vmem = pl.BlockSpec(memory_space=pltpu.MemorySpace.VMEM)
    kernel = functools.partial(_lsthm_cell_kernel, cell_size)

    c_t, h_t = pl.pallas_call(
        kernel,
        out_shape=(
            jax.ShapeDtypeStruct((B, cell_size), dtype),
            jax.ShapeDtypeStruct((B, cell_size), dtype),
        ),
        in_specs=[vmem] * 6,
        out_specs=(vmem, vmem),
        # In-place recurrent-state update: c (input 2) -> c_t, h (input 1) -> h_t.
        input_output_aliases={2: 0, 1: 1},
    )(xz, h, c, packed["w_xz"], packed["w_u"], packed["b_cat"])
    return c_t, h_t


# ----------------------------------------------------------------------------
# Sequence-fused kernel: T timesteps in one pallas_call, TU steps unrolled per
# grid iteration.  Only the recurrent (C, 4C) matmul lives inside the loop;
# the input/hybrid projection is precomputed outside as one big GEMM.
# ----------------------------------------------------------------------------
def _lsthm_seq_kernel(cell_size, tu,
                      proj_ref, c0_ref, h0_ref, u_ref,
                      h_seq_ref, c_fin_ref,
                      c_s, h_s):
    cs = cell_size
    blk = pl.program_id(0)

    @pl.when(blk == 0)
    def _():
        c_s[...] = c0_ref[...].astype(jnp.float32)
        h_s[...] = h0_ref[...].astype(jnp.float32)

    u = u_ref[...]                       # (C, 4C), VMEM-resident across the grid

    def step(i, carry):
        h_prev = h_s[...].astype(u.dtype)
        # Small recurrent matmul only; projection (with bias) is precomputed.
        sums = (jnp.dot(h_prev, u, preferred_element_type=jnp.float32)
                + proj_ref[i])
        sig = jax.nn.sigmoid(sums[:, :3 * cs])
        ch_t = jnp.tanh(sums[:, 3 * cs:])
        c_t = sig[:, 0 * cs:1 * cs] * c_s[...] + sig[:, 1 * cs:2 * cs] * ch_t
        h_t = jnp.tanh(c_t) * sig[:, 2 * cs:3 * cs]
        c_s[...] = c_t
        h_s[...] = h_t
        h_seq_ref[i] = h_t.astype(h_seq_ref.dtype)
        return carry

    # Unrolled fixed-trip-count inner loop over the TU timesteps of this block.
    lax.fori_loop(0, tu, step, None, unroll=True)

    # Only the last iteration's cell state matters -> single guarded store.
    @pl.when(blk == pl.num_programs(0) - 1)
    def _():
        c_fin_ref[...] = c_s[...].astype(c_fin_ref.dtype)


def _pick_unroll(T, max_unroll):
    for cand in range(min(max_unroll, T), 0, -1):
        if T % cand == 0:
            return cand
    return 1


def lsthm_sequence(x_seq, c0, h0, z_seq, packed, cell_size, max_unroll=4):
    """Run the LSTHM cell over T timesteps with a single Pallas kernel.

    x_seq: (T, B, in_size), z_seq: (T, B, hybrid_in_size), c0/h0: (B, C).
    Returns (c_T, h_seq) with c_T: (B, C) and h_seq: (T, B, C).
    """
    T, B, in_size = x_seq.shape
    hy = z_seq.shape[2]
    C = cell_size
    dtype = c0.dtype
    w_xz = packed["w_xz"]
    w_u = packed["w_u"]

    # Hoisted, recurrence-independent projection for ALL timesteps as one
    # large GEMM: (T*B, in+hy) x (in+hy, 4C), bias folded in (f32).
    xz = jnp.concatenate([x_seq, z_seq], axis=2).reshape(T * B, in_size + hy)
    proj = (jnp.dot(xz.astype(w_xz.dtype), w_xz,
                    preferred_element_type=jnp.float32)
            + packed["b_cat"]).reshape(T, B, 4 * C)

    tu = _pick_unroll(T, max_unroll)
    kernel = functools.partial(_lsthm_seq_kernel, C, tu)

    grid_spec = pltpu.PrefetchScalarGridSpec(
        num_scalar_prefetch=0,
        grid=(T // tu,),
        in_specs=[
            pl.BlockSpec((tu, B, 4 * C), lambda t: (t, 0, 0)),   # proj streamed
            pl.BlockSpec((B, C), lambda t: (0, 0)),              # c0 (read at t=0)
            pl.BlockSpec((B, C), lambda t: (0, 0)),              # h0 (read at t=0)
            pl.BlockSpec((C, 4 * C), lambda t: (0, 0)),          # U resident
        ],
        out_specs=(
            pl.BlockSpec((tu, B, C), lambda t: (t, 0, 0)),       # h_t per block
            pl.BlockSpec((B, C), lambda t: (0, 0)),              # final c (resident)
        ),
        scratch_shapes=[
            pltpu.VMEM((B, C), jnp.float32),                     # carried c state
            pltpu.VMEM((B, C), jnp.float32),                     # carried h state
        ],
    )

    h_seq, c_T = pl.pallas_call(
        kernel,
        out_shape=(
            jax.ShapeDtypeStruct((T, B, C), dtype),
            jax.ShapeDtypeStruct((B, C), dtype),
        ),
        grid_spec=grid_spec,
        compiler_params=pltpu.CompilerParams(
            dimension_semantics=("arbitrary",)),   # state carried -> sequential
    )(proj, c0, h0, w_u)
    return c_T, h_seq


# ----------------------------------------------------------------------------
# Pure-JAX references (mirror the PyTorch forward).
# ----------------------------------------------------------------------------
def _reference_step(x, c, h, z, params, cell_size):
    sums = (x @ params["W_w"].T + params["W_b"]
            + h @ params["U_w"].T + params["U_b"]
            + z @ params["V_w"].T + params["V_b"])
    f_t = jax.nn.sigmoid(sums[:, :cell_size])
    i_t = jax.nn.sigmoid(sums[:, cell_size:2 * cell_size])
    o_t = jax.nn.sigmoid(sums[:, 2 * cell_size:3 * cell_size])
    ch_t = jnp.tanh(sums[:, 3 * cell_size:])
    c_t = f_t * c + i_t * ch_t
    h_t = jnp.tanh(c_t) * o_t
    return c_t, h_t


if __name__ == "__main__":
    # Small shapes consistent with the module: batch=8, cell_size=32,
    # in_size=16, hybrid_in_size=24, T=8 timesteps for the fused-sequence test.
    B, cell_size, in_size, hybrid_in_size, T = 8, 32, 16, 24, 8

    key = jax.random.PRNGKey(0)
    keys = jax.random.split(key, 12)

    x = jax.random.normal(keys[0], (B, in_size), jnp.float32)
    c = jax.random.normal(keys[1], (B, cell_size), jnp.float32)
    h = jax.random.normal(keys[2], (B, cell_size), jnp.float32)
    z = jax.random.normal(keys[3], (B, hybrid_in_size), jnp.float32)
    x_seq = jax.random.normal(keys[10], (T, B, in_size), jnp.float32)
    z_seq = jax.random.normal(keys[11], (T, B, hybrid_in_size), jnp.float32)

    # Deterministic synthetic parameters (PyTorch nn.Linear shapes: (out, in)).
    params = {
        "W_w": 0.1 * jax.random.normal(keys[4], (4 * cell_size, in_size), jnp.float32),
        "W_b": 0.1 * jax.random.normal(keys[5], (4 * cell_size,), jnp.float32),
        "U_w": 0.1 * jax.random.normal(keys[6], (4 * cell_size, cell_size), jnp.float32),
        "U_b": 0.1 * jax.random.normal(keys[7], (4 * cell_size,), jnp.float32),
        "V_w": 0.1 * jax.random.normal(keys[8], (4 * cell_size, hybrid_in_size), jnp.float32),
        "V_b": 0.1 * jax.random.normal(keys[9], (4 * cell_size,), jnp.float32),
    }

    # One-time packing (split recurrence-free / recurrent weights, summed f32 bias).
    packed = pack_lsthm_params(params)

    # References computed up front (the single-step kernel aliases c/h in place).
    c_ref1, h_ref1 = _reference_step(x, c, h, z, params, cell_size)

    def scan_step(carry, xz_t):
        cc, hh = carry
        ct, ht = _reference_step(xz_t[0], cc, hh, xz_t[1], params, cell_size)
        return (ct, ht), ht

    (c_T_ref, _), h_seq_ref = jax.lax.scan(scan_step, (c, h), (x_seq, z_seq))

    # --- sequence-fused variant (primary path: T steps in one pallas_call) ---
    c_T, h_seq = lsthm_sequence(x_seq, c, h, z_seq, packed, cell_size)
    jax.block_until_ready((c_T, h_seq))

    assert c_T.shape == (B, cell_size) and h_seq.shape == (T, B, cell_size)
    assert jnp.allclose(c_T, c_T_ref, atol=1e-4, rtol=1e-4)
    assert jnp.allclose(h_seq, h_seq_ref, atol=1e-4, rtol=1e-4)

    # --- single-step cell (fallback path; donates c/h via aliasing) ----------
    c_t, h_t = lsthm_cell(x, c, h, z, packed, cell_size)
    jax.block_until_ready((c_t, h_t))

    assert c_t.shape == (B, cell_size) and h_t.shape == (B, cell_size)
    assert jnp.allclose(c_t, c_ref1, atol=1e-4, rtol=1e-4)
    assert jnp.allclose(h_t, h_ref1, atol=1e-4, rtol=1e-4)

    print("KERNEL_OK")
</pallas_src>

<mosaic_0001>
module attributes {stable_mosaic.version = 11 : i64} {
  func.func @_lsthm_seq_kernel(%arg0: i32, %arg1: memref<4x8x128xf32, #tpu.memory_space<vmem>>, %arg2: memref<8x32xf32, #tpu.memory_space<vmem>>, %arg3: memref<8x32xf32, #tpu.memory_space<vmem>>, %arg4: memref<32x128xf32, #tpu.memory_space<vmem>>, %arg5: memref<4x8x32xf32, #tpu.memory_space<vmem>>, %arg6: memref<8x32xf32, #tpu.memory_space<vmem>>, %arg7: memref<8x32xf32, #tpu.memory_space<vmem>>, %arg8: memref<8x32xf32, #tpu.memory_space<vmem>>) attributes {dimension_semantics = [#tpu.dimension_semantics<arbitrary>], iteration_bounds = array<i64: 2>, scalar_prefetch = 0 : i64, scratch_operands = 2 : i64, tpu.core_type = #tpu.core_type<tc>, window_params = [{transform_indices = @transform_0, window_bounds = array<i64: 4, 8, 128>}, {pipeline_mode = #tpu.pipeline_mode<synchronous>, transform_indices = @transform_1, window_bounds = array<i64: 8, 32>}, {pipeline_mode = #tpu.pipeline_mode<synchronous>, transform_indices = @transform_2, window_bounds = array<i64: 8, 32>}, {pipeline_mode = #tpu.pipeline_mode<synchronous>, transform_indices = @transform_3, window_bounds = array<i64: 32, 128>}, {transform_indices = @transform_4, window_bounds = array<i64: 4, 8, 32>}, {pipeline_mode = #tpu.pipeline_mode<synchronous>, transform_indices = @transform_5, window_bounds = array<i64: 8, 32>}]} {
    %c0_i32 = arith.constant 0 : i32
    %0 = arith.cmpi eq, %arg0, %c0_i32 : i32
    %1 = arith.extui %0 : i1 to i32
    %c0_i32_0 = arith.constant 0 : i32
    %2 = arith.cmpi ne, %1, %c0_i32_0 : i32
    scf.if %2 {
      %c0_60 = arith.constant 0 : index
      %c0_61 = arith.constant 0 : index
      %123 = vector.load %arg2[%c0_60, %c0_61] : memref<8x32xf32, #tpu.memory_space<vmem>>, vector<8x32xf32>
      %c0_62 = arith.constant 0 : index
      %c0_63 = arith.constant 0 : index
      %124 = vector.load %arg7[%c0_62, %c0_63] : memref<8x32xf32, #tpu.memory_space<vmem>>, vector<8x32xf32>
      tpu.vector_store %arg7[%c0_62, %c0_63], %123 {strides = array<i32>} : memref<8x32xf32, #tpu.memory_space<vmem>>, vector<8x32xf32>,
      %c0_64 = arith.constant 0 : index
      %c0_65 = arith.constant 0 : index
      %125 = vector.load %arg3[%c0_64, %c0_65] : memref<8x32xf32, #tpu.memory_space<vmem>>, vector<8x32xf32>
      %c0_66 = arith.constant 0 : index
      %c0_67 = arith.constant 0 : index
      %126 = vector.load %arg8[%c0_66, %c0_67] : memref<8x32xf32, #tpu.memory_space<vmem>>, vector<8x32xf32>
      tpu.vector_store %arg8[%c0_66, %c0_67], %125 {strides = array<i32>} : memref<8x32xf32, #tpu.memory_space<vmem>>, vector<8x32xf32>,
    } else {
    }
    %c0 = arith.constant 0 : index
    %c0_1 = arith.constant 0 : index
    %3 = vector.load %arg4[%c0, %c0_1] : memref<32x128xf32, #tpu.memory_space<vmem>>, vector<32x128xf32>
    %c0_i32_2 = arith.constant 0 : i32
    %c0_3 = arith.constant 0 : index
    %c0_4 = arith.constant 0 : index
    %4 = vector.load %arg8[%c0_3, %c0_4] : memref<8x32xf32, #tpu.memory_space<vmem>>, vector<8x32xf32>
    %cst = arith.constant dense<0.000000e+00> : vector<8x128xf32>
    %5 = tpu.matmul %4, %3, %cst {dimension_numbers = #tpu.dot_dimension_numbers<[1], [0], [0], [1], [0, 0, 1, 1], [], []>} : vector<8x32xf32>, vector<32x128xf32>, vector<8x128xf32> -> vector<8x128xf32>
    %6 = arith.index_cast %c0_i32_2 : i32 to index
    %c0_5 = arith.constant 0 : index
    %c0_6 = arith.constant 0 : index
    %7 = vector.load %arg1[%6, %c0_5, %c0_6] : memref<4x8x128xf32, #tpu.memory_space<vmem>>, vector<1x8x128xf32>
    %8 = vector.shape_cast %7 : vector<1x8x128xf32> to vector<8x128xf32>
    %9 = arith.addf %5, %8 : vector<8x128xf32>
    %10 = vector.extract_strided_slice %9 {offsets = [0, 0], sizes = [8, 96], strides = [1, 1]} : vector<8x128xf32> to vector<8x96xf32>
    %11 = arith.negf %10 : vector<8x96xf32>
    %12 = math.exp %11 : vector<8x96xf32>
    %cst_7 = arith.constant 1.000000e+00 : f32
    %13 = vector.broadcast %cst_7 : f32 to vector<8x96xf32>
    %14 = arith.addf %13, %12 : vector<8x96xf32>
    %15 = arith.divf %13, %14 : vector<8x96xf32>
    %16 = vector.extract_strided_slice %9 {offsets = [0, 96], sizes = [8, 32], strides = [1, 1]} : vector<8x128xf32> to vector<8x32xf32>
    %17 = math.tanh %16 : vector<8x32xf32>
    %18 = vector.extract_strided_slice %15 {offsets = [0, 0], sizes = [8, 32], strides = [1, 1]} : vector<8x96xf32> to vector<8x32xf32>
    %c0_8 = arith.constant 0 : index
    %c0_9 = arith.constant 0 : index
    %19 = vector.load %arg7[%c0_8, %c0_9] : memref<8x32xf32, #tpu.memory_space<vmem>>, vector<8x32xf32>
    %20 = arith.mulf %18, %19 : vector<8x32xf32>
    %21 = vector.extract_strided_slice %15 {offsets = [0, 32], sizes = [8, 32], strides = [1, 1]} : vector<8x96xf32> to vector<8x32xf32>
    %22 = arith.mulf %21, %17 : vector<8x32xf32>
    %23 = arith.addf %20, %22 : vector<8x32xf32>
    %24 = math.tanh %23 : vector<8x32xf32>
    %25 = vector.extract_strided_slice %15 {offsets = [0, 64], sizes = [8, 32], strides = [1, 1]} : vector<8x96xf32> to vector<8x32xf32>
    %26 = arith.mulf %24, %25 : vector<8x32xf32>
    %c0_10 = arith.constant 0 : index
    %c0_11 = arith.constant 0 : index
    %27 = vector.load %arg7[%c0_10, %c0_11] : memref<8x32xf32, #tpu.memory_space<vmem>>, vector<8x32xf32>
    tpu.vector_store %arg7[%c0_10, %c0_11], %23 {strides = array<i32>} : memref<8x32xf32, #tpu.memory_space<vmem>>, vector<8x32xf32>,
    %c0_12 = arith.constant 0 : index
    %c0_13 = arith.constant 0 : index
    %28 = vector.load %arg8[%c0_12, %c0_13] : memref<8x32xf32, #tpu.memory_space<vmem>>, vector<8x32xf32>
    tpu.vector_store %arg8[%c0_12, %c0_13], %26 {strides = array<i32>} : memref<8x32xf32, #tpu.memory_space<vmem>>, vector<8x32xf32>,
    %29 = arith.index_cast %c0_i32_2 : i32 to index
    %c0_14 = arith.constant 0 : index
    %c0_15 = arith.constant 0 : index
    %30 = vector.load %arg5[%29, %c0_14, %c0_15] : memref<4x8x32xf32, #tpu.memory_space<vmem>>, vector<1x8x32xf32>
    %31 = vector.shape_cast %30 : vector<1x8x32xf32> to vector<8x32xf32>
    %32 = vector.shape_cast %26 : vector<8x32xf32> to vector<1x8x32xf32>
    tpu.vector_store %arg5[%29, %c0_14, %c0_15], %32 {strides = array<i32>} : memref<4x8x32xf32, #tpu.memory_space<vmem>>, vector<1x8x32xf32>,
    %c1_i32 = arith.constant 1 : i32
    %c0_16 = arith.constant 0 : index
    %c0_17 = arith.constant 0 : index
    %33 = vector.load %arg8[%c0_16, %c0_17] : memref<8x32xf32, #tpu.memory_space<vmem>>, vector<8x32xf32>
    %cst_18 = arith.constant dense<0.000000e+00> : vector<8x128xf32>
    %34 = tpu.matmul %33, %3, %cst_18 {dimension_numbers = #tpu.dot_dimension_numbers<[1], [0], [0], [1], [0, 0, 1, 1], [], []>} : vector<8x32xf32>, vector<32x128xf32>, vector<8x128xf32> -> vector<8x128xf32>
    %35 = arith.index_cast %c1_i32 : i32 to index
    %c0_19 = arith.constant 0 : index
    %c0_20 = arith.constant 0 : index
    %36 = vector.load %arg1[%35, %c0_19, %c0_20] : memref<4x8x128xf32, #tpu.memory_space<vmem>>, vector<1x8x128xf32>
    %37 = vector.shape_cast %36 : vector<1x8x128xf32> to vector<8x128xf32>
    %38 = arith.addf %34, %37 : vector<8x128xf32>
    %39 = vector.extract_strided_slice %38 {offsets = [0, 0], sizes = [8, 96], strides = [1, 1]} : vector<8x128xf32> to vector<8x96xf32>
    %40 = arith.negf %39 : vector<8x96xf32>
    %41 = math.exp %40 : vector<8x96xf32>
    %cst_21 = arith.constant 1.000000e+00 : f32
    %42 = vector.broadcast %cst_21 : f32 to vector<8x96xf32>
    %43 = arith.addf %42, %41 : vector<8x96xf32>
    %44 = arith.divf %42, %43 : vector<8x96xf32>
    %45 = vector.extract_strided_slice %38 {offsets = [0, 96], sizes = [8, 32], strides = [1, 1]} : vector<8x128xf32> to vector<8x32xf32>
    %46 = math.tanh %45 : vector<8x32xf32>
    %47 = vector.extract_strided_slice %44 {offsets = [0, 0], sizes = [8, 32], strides = [1, 1]} : vector<8x96xf32> to vector<8x32xf32>
    %c0_22 = arith.constant 0 : index
    %c0_23 = arith.constant 0 : index
    %48 = vector.load %arg7[%c0_22, %c0_23] : memref<8x32xf32, #tpu.memory_space<vmem>>, vector<8x32xf32>
    %49 = arith.mulf %47, %48 : vector<8x32xf32>
    %50 = vector.extract_strided_slice %44 {offsets = [0, 32], sizes = [8, 32], strides = [1, 1]} : vector<8x96xf32> to vector<8x32xf32>
    %51 = arith.mulf %50, %46 : vector<8x32xf32>
    %52 = arith.addf %49, %51 : vector<8x32xf32>
    %53 = math.tanh %52 : vector<8x32xf32>
    %54 = vector.extract_strided_slice %44 {offsets = [0, 64], sizes = [8, 32], strides = [1, 1]} : vector<8x96xf32> to vector<8x32xf32>
    %55 = arith.mulf %53, %54 : vector<8x32xf32>
    %c0_24 = arith.constant 0 : index
    %c0_25 = arith.constant 0 : index
    %56 = vector.load %arg7[%c0_24, %c0_25] : memref<8x32xf32, #tpu.memory_space<vmem>>, vector<8x32xf32>
    tpu.vector_store %arg7[%c0_24, %c0_25], %52 {strides = array<i32>} : memref<8x32xf32, #tpu.memory_space<vmem>>, vector<8x32xf32>,
    %c0_26 = arith.constant 0 : index
    %c0_27 = arith.constant 0 : index
    %57 = vector.load %arg8[%c0_26, %c0_27] : memref<8x32xf32, #tpu.memory_space<vmem>>, vector<8x32xf32>
    tpu.vector_store %arg8[%c0_26, %c0_27], %55 {strides = array<i32>} : memref<8x32xf32, #tpu.memory_space<vmem>>, vector<8x32xf32>,
    %58 = arith.index_cast %c1_i32 : i32 to index
    %c0_28 = arith.constant 0 : index
    %c0_29 = arith.constant 0 : index
    %59 = vector.load %arg5[%58, %c0_28, %c0_29] : memref<4x8x32xf32, #tpu.memory_space<vmem>>, vector<1x8x32xf32>
    %60 = vector.shape_cast %59 : vector<1x8x32xf32> to vector<8x32xf32>
    %61 = vector.shape_cast %55 : vector<8x32xf32> to vector<1x8x32xf32>
    tpu.vector_store %arg5[%58, %c0_28, %c0_29], %61 {strides = array<i32>} : memref<4x8x32xf32, #tpu.memory_space<vmem>>, vector<1x8x32xf32>,
    %c2_i32 = arith.constant 2 : i32
    %c0_30 = arith.constant 0 : index
    %c0_31 = arith.constant 0 : index
    %62 = vector.load %arg8[%c0_30, %c0_31] : memref<8x32xf32, #tpu.memory_space<vmem>>, vector<8x32xf32>
    %cst_32 = arith.constant dense<0.000000e+00> : vector<8x128xf32>
    %63 = tpu.matmul %62, %3, %cst_32 {dimension_numbers = #tpu.dot_dimension_numbers<[1], [0], [0], [1], [0, 0, 1, 1], [], []>} : vector<8x32xf32>, vector<32x128xf32>, vector<8x128xf32> -> vector<8x128xf32>
    %64 = arith.index_cast %c2_i32 : i32 to index
    %c0_33 = arith.constant 0 : index
    %c0_34 = arith.constant 0 : index
    %65 = vector.load %arg1[%64, %c0_33, %c0_34] : memref<4x8x128xf32, #tpu.memory_space<vmem>>, vector<1x8x128xf32>
    %66 = vector.shape_cast %65 : vector<1x8x128xf32> to vector<8x128xf32>
    %67 = arith.addf %63, %66 : vector<8x128xf32>
    %68 = vector.extract_strided_slice %67 {offsets = [0, 0], sizes = [8, 96], strides = [1, 1]} : vector<8x128xf32> to vector<8x96xf32>
    %69 = arith.negf %68 : vector<8x96xf32>
    %70 = math.exp %69 : vector<8x96xf32>
    %cst_35 = arith.constant 1.000000e+00 : f32
    %71 = vector.broadcast %cst_35 : f32 to vector<8x96xf32>
    %72 = arith.addf %71, %70 : vector<8x96xf32>
    %73 = arith.divf %71, %72 : vector<8x96xf32>
    %74 = vector.extract_strided_slice %67 {offsets = [0, 96], sizes = [8, 32], strides = [1, 1]} : vector<8x128xf32> to vector<8x32xf32>
    %75 = math.tanh %74 : vector<8x32xf32>
    %76 = vector.extract_strided_slice %73 {offsets = [0, 0], sizes = [8, 32], strides = [1, 1]} : vector<8x96xf32> to vector<8x32xf32>
    %c0_36 = arith.constant 0 : index
    %c0_37 = arith.constant 0 : index
    %77 = vector.load %arg7[%c0_36, %c0_37] : memref<8x32xf32, #tpu.memory_space<vmem>>, vector<8x32xf32>
    %78 = arith.mulf %76, %77 : vector<8x32xf32>
    %79 = vector.extract_strided_slice %73 {offsets = [0, 32], sizes = [8, 32], strides = [1, 1]} : vector<8x96xf32> to vector<8x32xf32>
    %80 = arith.mulf %79, %75 : vector<8x32xf32>
    %81 = arith.addf %78, %80 : vector<8x32xf32>
    %82 = math.tanh %81 : vector<8x32xf32>
    %83 = vector.extract_strided_slice %73 {offsets = [0, 64], sizes = [8, 32], strides = [1, 1]} : vector<8x96xf32> to vector<8x32xf32>
    %84 = arith.mulf %82, %83 : vector<8x32xf32>
    %c0_38 = arith.constant 0 : index
    %c0_39 = arith.constant 0 : index
    %85 = vector.load %arg7[%c0_38, %c0_39] : memref<8x32xf32, #tpu.memory_space<vmem>>, vector<8x32xf32>
    tpu.vector_store %arg7[%c0_38, %c0_39], %81 {strides = array<i32>} : memref<8x32xf32, #tpu.memory_space<vmem>>, vector<8x32xf32>,
    %c0_40 = arith.constant 0 : index
    %c0_41 = arith.constant 0 : index
    %86 = vector.load %arg8[%c0_40, %c0_41] : memref<8x32xf32, #tpu.memory_space<vmem>>, vector<8x32xf32>
    tpu.vector_store %arg8[%c0_40, %c0_41], %84 {strides = array<i32>} : memref<8x32xf32, #tpu.memory_space<vmem>>, vector<8x32xf32>,
    %87 = arith.index_cast %c2_i32 : i32 to index
    %c0_42 = arith.constant 0 : index
    %c0_43 = arith.constant 0 : index
    %88 = vector.load %arg5[%87, %c0_42, %c0_43] : memref<4x8x32xf32, #tpu.memory_space<vmem>>, vector<1x8x32xf32>
    %89 = vector.shape_cast %88 : vector<1x8x32xf32> to vector<8x32xf32>
    %90 = vector.shape_cast %84 : vector<8x32xf32> to vector<1x8x32xf32>
    tpu.vector_store %arg5[%87, %c0_42, %c0_43], %90 {strides = array<i32>} : memref<4x8x32xf32, #tpu.memory_space<vmem>>, vector<1x8x32xf32>,
    %c3_i32 = arith.constant 3 : i32
    %c0_44 = arith.constant 0 : index
    %c0_45 = arith.constant 0 : index
    %91 = vector.load %arg8[%c0_44, %c0_45] : memref<8x32xf32, #tpu.memory_space<vmem>>, vector<8x32xf32>
    %cst_46 = arith.constant dense<0.000000e+00> : vector<8x128xf32>
    %92 = tpu.matmul %91, %3, %cst_46 {dimension_numbers = #tpu.dot_dimension_numbers<[1], [0], [0], [1], [0, 0, 1, 1], [], []>} : vector<8x32xf32>, vector<32x128xf32>, vector<8x128xf32> -> vector<8x128xf32>
    %93 = arith.index_cast %c3_i32 : i32 to index
    %c0_47 = arith.constant 0 : index
    %c0_48 = arith.constant 0 : index
    %94 = vector.load %arg1[%93, %c0_47, %c0_48] : memref<4x8x128xf32, #tpu.memory_space<vmem>>, vector<1x8x128xf32>
    %95 = vector.shape_cast %94 : vector<1x8x128xf32> to vector<8x128xf32>
    %96 = arith.addf %92, %95 : vector<8x128xf32>
    %97 = vector.extract_strided_slice %96 {offsets = [0, 0], sizes = [8, 96], strides = [1, 1]} : vector<8x128xf32> to vector<8x96xf32>
    %98 = arith.negf %97 : vector<8x96xf32>
    %99 = math.exp %98 : vector<8x96xf32>
    %cst_49 = arith.constant 1.000000e+00 : f32
    %100 = vector.broadcast %cst_49 : f32 to vector<8x96xf32>
    %101 = arith.addf %100, %99 : vector<8x96xf32>
    %102 = arith.divf %100, %101 : vector<8x96xf32>
    %103 = vector.extract_strided_slice %96 {offsets = [0, 96], sizes = [8, 32], strides = [1, 1]} : vector<8x128xf32> to vector<8x32xf32>
    %104 = math.tanh %103 : vector<8x32xf32>
    %105 = vector.extract_strided_slice %102 {offsets = [0, 0], sizes = [8, 32], strides = [1, 1]} : vector<8x96xf32> to vector<8x32xf32>
    %c0_50 = arith.constant 0 : index
    %c0_51 = arith.constant 0 : index
    %106 = vector.load %arg7[%c0_50, %c0_51] : memref<8x32xf32, #tpu.memory_space<vmem>>, vector<8x32xf32>
    %107 = arith.mulf %105, %106 : vector<8x32xf32>
    %108 = vector.extract_strided_slice %102 {offsets = [0, 32], sizes = [8, 32], strides = [1, 1]} : vector<8x96xf32> to vector<8x32xf32>
    %109 = arith.mulf %108, %104 : vector<8x32xf32>
    %110 = arith.addf %107, %109 : vector<8x32xf32>
    %111 = math.tanh %110 : vector<8x32xf32>
    %112 = vector.extract_strided_slice %102 {offsets = [0, 64], sizes = [8, 32], strides = [1, 1]} : vector<8x96xf32> to vector<8x32xf32>
    %113 = arith.mulf %111, %112 : vector<8x32xf32>
    %c0_52 = arith.constant 0 : index
    %c0_53 = arith.constant 0 : index
    %114 = vector.load %arg7[%c0_52, %c0_53] : memref<8x32xf32, #tpu.memory_space<vmem>>, vector<8x32xf32>
    tpu.vector_store %arg7[%c0_52, %c0_53], %110 {strides = array<i32>} : memref<8x32xf32, #tpu.memory_space<vmem>>, vector<8x32xf32>,
    %c0_54 = arith.constant 0 : index
    %c0_55 = arith.constant 0 : index
    %115 = vector.load %arg8[%c0_54, %c0_55] : memref<8x32xf32, #tpu.memory_space<vmem>>, vector<8x32xf32>
    tpu.vector_store %arg8[%c0_54, %c0_55], %113 {strides = array<i32>} : memref<8x32xf32, #tpu.memory_space<vmem>>, vector<8x32xf32>,
    %116 = arith.index_cast %c3_i32 : i32 to index
    %c0_56 = arith.constant 0 : index
    %c0_57 = arith.constant 0 : index
    %117 = vector.load %arg5[%116, %c0_56, %c0_57] : memref<4x8x32xf32, #tpu.memory_space<vmem>>, vector<1x8x32xf32>
    %118 = vector.shape_cast %117 : vector<1x8x32xf32> to vector<8x32xf32>
    %119 = vector.shape_cast %113 : vector<8x32xf32> to vector<1x8x32xf32>
    tpu.vector_store %arg5[%116, %c0_56, %c0_57], %119 {strides = array<i32>} : memref<4x8x32xf32, #tpu.memory_space<vmem>>, vector<1x8x32xf32>,
    %c4_i32 = arith.constant 4 : i32
    %c1_i32_58 = arith.constant 1 : i32
    %120 = arith.cmpi eq, %arg0, %c1_i32_58 : i32
    %121 = arith.extui %120 : i1 to i32
    %c0_i32_59 = arith.constant 0 : i32
    %122 = arith.cmpi ne, %121, %c0_i32_59 : i32
    scf.if %122 {
      %c0_60 = arith.constant 0 : index
      %c0_61 = arith.constant 0 : index
      %123 = vector.load %arg7[%c0_60, %c0_61] : memref<8x32xf32, #tpu.memory_space<vmem>>, vector<8x32xf32>
      %c0_62 = arith.constant 0 : index
      %c0_63 = arith.constant 0 : index
      %124 = vector.load %arg6[%c0_62, %c0_63] : memref<8x32xf32, #tpu.memory_space<vmem>>, vector<8x32xf32>
      tpu.vector_store %arg6[%c0_62, %c0_63], %123 {strides = array<i32>} : memref<8x32xf32, #tpu.memory_space<vmem>>, vector<8x32xf32>,
    } else {
    }
    return
  }
  func.func @transform_0(%arg0: i32) -> (i32, i32, i32) {
    %c0_i32 = arith.constant 0 : i32
    %c0_i32_0 = arith.constant 0 : i32
    %c0_i32_1 = arith.constant 0 : i32
    return %arg0, %c0_i32, %c0_i32_0 : i32, i32, i32
  }
  func.func @transform_1(%arg0: i32) -> (i32, i32) {
    %c0_i32 = arith.constant 0 : i32
    %c0_i32_0 = arith.constant 0 : i32
    %c0_i32_1 = arith.constant 0 : i32
    return %c0_i32, %c0_i32_0 : i32, i32
  }
  func.func @transform_2(%arg0: i32) -> (i32, i32) {
    %c0_i32 = arith.constant 0 : i32
    %c0_i32_0 = arith.constant 0 : i32
    %c0_i32_1 = arith.constant 0 : i32
    return %c0_i32, %c0_i32_0 : i32, i32
  }
  func.func @transform_3(%arg0: i32) -> (i32, i32) {
    %c0_i32 = arith.constant 0 : i32
    %c0_i32_0 = arith.constant 0 : i32
    %c0_i32_1 = arith.constant 0 : i32
    return %c0_i32, %c0_i32_0 : i32, i32
  }
  func.func @transform_4(%arg0: i32) -> (i32, i32, i32) {
    %c0_i32 = arith.constant 0 : i32
    %c0_i32_0 = arith.constant 0 : i32
    %c0_i32_1 = arith.constant 0 : i32
    return %arg0, %c0_i32, %c0_i32_0 : i32, i32, i32
  }
  func.func @transform_5(%arg0: i32) -> (i32, i32) {
    %c0_i32 = arith.constant 0 : i32
    %c0_i32_0 = arith.constant 0 : i32
    %c0_i32_1 = arith.constant 0 : i32
    return %c0_i32, %c0_i32_0 : i32, i32
  }
}

</mosaic_0001>

<llo_original>
// kernel: tpu_custom_call.1
$region0: #{tpu_custom_call.1}
  #allocation0 [shape = 'u32[]', space=smem, size = 0x4, offset = 0x4, fixed_abs, tag = 'smem constant byte address 0x4 - core index']
  #allocation1 [shape = 'u32[72,128]{1,0:T(1,128)}', space=vmem, size = 0x9000, scoped, tag = 'internal scratch']
  #allocation2 [shape = 'f32[8,32]{1,0:T(8,128)}', space=vmem, size = 0x1000, scoped, tag = 'scratch operand']
  #allocation3 [shape = 'f32[8,32]{1,0:T(8,128)}', space=vmem, size = 0x1000, scoped, tag = 'scratch operand']
  %s0 = inlined_call_operand.hbm [shape: f32[8,8,128], index: 0, kind: input, shape index: {}]
  %s1 = inlined_call_operand.hbm [shape: f32[8,32], index: 1, kind: input, shape index: {}]
  %s2 = inlined_call_operand.hbm [shape: f32[8,32], index: 2, kind: input, shape index: {}]
  %s3 = inlined_call_operand.hbm [shape: f32[32,128], index: 3, kind: input, shape index: {}]
  %s4 = inlined_call_operand.hbm [shape: f32[8,8,32], index: 4, kind: output, shape index: {0}]
  %s5 = inlined_call_operand.hbm [shape: f32[8,32], index: 5, kind: output, shape index: {1}]
  %6 = xla_tuple %s4, %s5
  %s7 = sld [smem:[#allocation0]]
  $region81: #{tpu_custom_call.1} parent=0
    _
  %s9 = ssub.s32 1, %s7
  %s10 = scalar_select 0, %s9, %s7
  $region1: #{tpu_custom_call.1} parent=0
    #allocation4 [shape = 'u8[32768]{0}', space=vmem, size = 0x8000, scoped, tag = 'input window, operand 0']
    #allocation5 [shape = 's32[2]{0}', space=sflag, size = 0x8, scoped, tag = 'scoped memory for tpu_custom_call.1']
    #allocation6 [shape = 's32[2]{0}', space=sflag, size = 0x8, scoped, tag = 'scoped memory for tpu_custom_call.1']
    #allocation7 [shape = 'u8[4096]{0}', space=vmem, size = 0x1000, scoped, tag = 'input window, operand 1, single buffered']
    #allocation8 [shape = 's32[1]{0}', space=sflag, size = 0x4, scoped, tag = 'scoped memory for tpu_custom_call.1']
    #allocation9 [shape = 'u8[4096]{0}', space=vmem, size = 0x1000, scoped, tag = 'input window, operand 2, single buffered']
    #allocation10 [shape = 'u8[16384]{0}', space=vmem, size = 0x4000, scoped, tag = 'input window, operand 3, single buffered']
    #allocation11 [shape = 's32[1]{0}', space=sflag, size = 0x4, scoped, tag = 'scoped memory for tpu_custom_call.1']
    #allocation12 [shape = 'u8[32768]{0}', space=vmem, size = 0x8000, scoped, tag = 'output window, operand 0']
    #allocation13 [shape = 'u8[4096]{0}', space=vmem, size = 0x1000, scoped, tag = 'output window, operand 1, single buffered']
    #allocation14 [shape = 's32[1]{0}', space=sflag, size = 0x4, scoped, tag = 'scoped memory for tpu_custom_call.1']
    %11 = vsyncpa [#allocation5], 0
    %s12 = scalar_lea.sflag [#allocation5], 1
    %13 = vsyncpa %s12, 0
    %14 = vsyncpa [#allocation8], 0
    %15 = vsyncpa [#allocation11], 0
    %16 = vsyncpa [#allocation6], 0
    %s17 = scalar_lea.sflag [#allocation6], 1
    %18 = vsyncpa %s17, 0
    %19 = vsyncpa [#allocation14], 0
    loop: start=0, step=1, limit=4
    $region2: #{tpu_custom_call.1} parent=1 // loop_pre_header
      _
    $region3: #{tpu_custom_call.1} parent=1 // loop_header
      %s21 = sphi 0, %s25
      %p22 = scmp.ge.s32.totalorder %s21, 4
      %s31 = sphi 0, %s33
      %s34 = sphi 0, %s31
      %s35 = sphi 0, %s34
      %s51 = sphi 0, %s35
      %s55 = sphi 0, %s55
      %s57 = sphi 0, %s55
      %s58 = sphi 0, %s57
      %s72 = sphi 0, %s58
      %s76 = sphi 0, %s76
      %s78 = sphi 0, %s76
      %s79 = sphi 0, %s78
      %s93 = sphi 0, %s79
      %s97 = sphi 0, %s97
      %s99 = sphi 0, %s97
      %s100 = sphi 0, %s99
      %s114 = sphi 0, %s100
      %s120 = sphi 0, %s122
      %s123 = sphi 0, %s120
      %s124 = sphi 0, %s123
      %s140 = sphi 0, %s124
      %s144 = sphi 0, %s144
      %s146 = sphi 0, %s144
      %s147 = sphi 0, %s146
      %s161 = sphi 0, %s147
    $region4: #{tpu_custom_call.1} parent=1 // loop_header_branch
      %24 = sbr.rel (%p22) target = $region8
    $region5: #{tpu_custom_call.1} parent=1 // loop_body
      %s26 = ssub.s32 %s21, 1
      %s27 = ssub.s32 %s21, 2
      %s28 = sadd.s32 %s21, 1
      %s29 = ssub.s32 %s21, %s28
      %p30 = scmp.eq.s32.totalorder %s29, 0
      %s32 = sadd.s32 %s31, 1
      %s33 = scalar_select %p30, %s31, %s32
      %p36 = pneg %p30
      %p37 = scmp.eq.s32.totalorder %s21, 1
      %p38 = por %p36, %p37
      %p39 = scmp.ne.s32.totalorder %s31, %s34
      %p40 = scmp.eq.s32.totalorder %s21, 0
      %p41 = por %p39, %p40
      %p42 = scmp.ne.s32.totalorder %s31, %s34
      %p43 = scmp.eq.s32.totalorder %s26, 1
      %p44 = por %p42, %p43
      %p45 = scmp.ne.s32.totalorder %s34, %s35
      %p46 = scmp.eq.s32.totalorder %s26, 0
      %p47 = por %p45, %p46
      %p48 = scmp.ne.s32.totalorder %s34, %s35
      %p49 = scmp.eq.s32.totalorder %s27, 1
      %p50 = por %p48, %p49
      %p52 = scmp.ne.s32.totalorder %s35, %s51
      %p53 = scmp.eq.s32.totalorder %s27, 0
      %p54 = por %p52, %p53
      %s56 = sadd.s32 %s55, 1
      %p59 = scmp.eq.s32.totalorder %s21, 1
      %p60 = scmp.ne.s32.totalorder %s55, %s57
      %p61 = scmp.eq.s32.totalorder %s21, 0
      %p62 = por %p60, %p61
      %p63 = scmp.ne.s32.totalorder %s55, %s57
      %p64 = scmp.eq.s32.totalorder %s26, 1
      %p65 = por %p63, %p64
      %p66 = scmp.ne.s32.totalorder %s57, %s58
      %p67 = scmp.eq.s32.totalorder %s26, 0
      %p68 = por %p66, %p67
      %p69 = scmp.ne.s32.totalorder %s57, %s58
      %p70 = scmp.eq.s32.totalorder %s27, 1
      %p71 = por %p69, %p70
      %p73 = scmp.ne.s32.totalorder %s58, %s72
      %p74 = scmp.eq.s32.totalorder %s27, 0
      %p75 = por %p73, %p74
      %s77 = sadd.s32 %s76, 1
      %p80 = scmp.eq.s32.totalorder %s21, 1
      %p81 = scmp.ne.s32.totalorder %s76, %s78
      %p82 = scmp.eq.s32.totalorder %s21, 0
      %p83 = por %p81, %p82
      %p84 = scmp.ne.s32.totalorder %s76, %s78
      %p85 = scmp.eq.s32.totalorder %s26, 1
      %p86 = por %p84, %p85
      %p87 = scmp.ne.s32.totalorder %s78, %s79
      %p88 = scmp.eq.s32.totalorder %s26, 0
      %p89 = por %p87, %p88
      %p90 = scmp.ne.s32.totalorder %s78, %s79
      %p91 = scmp.eq.s32.totalorder %s27, 1
      %p92 = por %p90, %p91
      %p94 = scmp.ne.s32.totalorder %s79, %s93
      %p95 = scmp.eq.s32.totalorder %s27, 0
      %p96 = por %p94, %p95
      %s98 = sadd.s32 %s97, 1
      %p101 = scmp.eq.s32.totalorder %s21, 1
      %p102 = scmp.ne.s32.totalorder %s97, %s99
      %p103 = scmp.eq.s32.totalorder %s21, 0
      %p104 = por %p102, %p103
      %p105 = scmp.ne.s32.totalorder %s97, %s99
      %p106 = scmp.eq.s32.totalorder %s26, 1
      %p107 = por %p105, %p106
      %p108 = scmp.ne.s32.totalorder %s99, %s100
      %p109 = scmp.eq.s32.totalorder %s26, 0
      %p110 = por %p108, %p109
      %p111 = scmp.ne.s32.totalorder %s99, %s100
      %p112 = scmp.eq.s32.totalorder %s27, 1
      %p113 = por %p111, %p112
      %p115 = scmp.ne.s32.totalorder %s100, %s114
      %p116 = scmp.eq.s32.totalorder %s27, 0
      %p117 = por %p115, %p116
      %s118 = ssub.s32 %s21, %s28
      %p119 = scmp.eq.s32.totalorder %s118, 0
      %s121 = sadd.s32 %s120, 1
      %s122 = scalar_select %p119, %s120, %s121
      %p125 = pneg %p119
      %p126 = scmp.eq.s32.totalorder %s21, 1
      %p127 = por %p125, %p126
      %p128 = scmp.ne.s32.totalorder %s120, %s123
      %p129 = scmp.eq.s32.totalorder %s21, 0
      %p130 = por %p128, %p129
      %p131 = scmp.ne.s32.totalorder %s120, %s123
      %p132 = scmp.eq.s32.totalorder %s26, 1
      %p133 = por %p131, %p132
      %p134 = scmp.ne.s32.totalorder %s123, %s124
      %p135 = scmp.eq.s32.totalorder %s26, 0
      %p136 = por %p134, %p135
      %p137 = scmp.ne.s32.totalorder %s123, %s124
      %p138 = scmp.eq.s32.totalorder %s27, 1
      %p139 = por %p137, %p138
      %p141 = scmp.ne.s32.totalorder %s124, %s140
      %p142 = scmp.eq.s32.totalorder %s27, 0
      %p143 = por %p141, %p142
      %s145 = sadd.s32 %s144, 1
      %p148 = scmp.eq.s32.totalorder %s21, 1
      %p149 = scmp.ne.s32.totalorder %s144, %s146
      %p150 = scmp.eq.s32.totalorder %s21, 0
      %p151 = por %p149, %p150
      %p152 = scmp.ne.s32.totalorder %s144, %s146
      %p153 = scmp.eq.s32.totalorder %s26, 1
      %p154 = por %p152, %p153
      %p155 = scmp.ne.s32.totalorder %s146, %s147
      %p156 = scmp.eq.s32.totalorder %s26, 0
      %p157 = por %p155, %p156
      %p158 = scmp.ne.s32.totalorder %s146, %s147
      %p159 = scmp.eq.s32.totalorder %s27, 1
      %p160 = por %p158, %p159
      %p162 = scmp.ne.s32.totalorder %s147, %s161
      %p163 = scmp.eq.s32.totalorder %s27, 0
      %p164 = por %p162, %p163
      %p165 = scmp.le.s32.totalorder 1, %s21
      %p166 = scmp.lt.s32.totalorder %s21, 3
      %p167 = pnand %p165, %p166
      %p168 = pneg %p167
      // Predicated region
      $region9: #{tpu_custom_call.1} parent=5 // pred_check
        _
      $region10: #{tpu_custom_call.1} parent=5 // pred_check_branch
        %170 = sbr.rel (%p167) target = $region12
      $region11: #{tpu_custom_call.1} parent=5 // pred_region
        %s171 = ssub.s32 %s21, 1
        // Predicated region
        $region13: #{tpu_custom_call.1} parent=11 // pred_check
          %p172 = pneg %p68
        $region14: #{tpu_custom_call.1} parent=11 // pred_check_branch
          %174 = sbr.rel (%p172) target = $region16
        $region15: #{tpu_custom_call.1} parent=11 // pred_region
          %176 = vsyncadd [#allocation8], 0
          %s178 = sshll.u32 %s1, 4
          %s179 = int_to_ptr.hbm [resolvable:$true] %s178
          %s180 = sshll.u32 [#allocation7], 4
          %s181 = int_to_ptr.vmem [resolvable:$true] %s180
          %183 = dma.hbm_to_vmem [thread:$0]  %s179, 128, %s181, [#allocation8]
        $region16: #{tpu_custom_call.1} parent=11 // pred_fallthru
          _
        // Predicated region
        $region17: #{tpu_custom_call.1} parent=11 // pred_check
          %p184 = pneg %p89
        $region18: #{tpu_custom_call.1} parent=11 // pred_check_branch
          %186 = sbr.rel (%p184) target = $region20
        $region19: #{tpu_custom_call.1} parent=11 // pred_region
          %188 = vsyncadd [#allocation8], 0
          %s190 = sshll.u32 %s2, 4
          %s191 = int_to_ptr.hbm [resolvable:$true] %s190
          %s192 = sshll.u32 [#allocation9], 4
          %s193 = int_to_ptr.vmem [resolvable:$true] %s192
          %195 = dma.hbm_to_vmem [thread:$0]  %s191, 128, %s193, [#allocation8]
        $region20: #{tpu_custom_call.1} parent=11 // pred_fallthru
          _
        // Predicated region
        $region21: #{tpu_custom_call.1} parent=11 // pred_check
          %p196 = pneg %p110
        $region22: #{tpu_custom_call.1} parent=11 // pred_check_branch
          %198 = sbr.rel (%p196) target = $region24
        $region23: #{tpu_custom_call.1} parent=11 // pred_region
          %200 = vsyncadd [#allocation11], 0
          %s201 = sshll.u32 %s3, 4
          %s202 = int_to_ptr.hbm [resolvable:$true] %s201
          %s203 = sshll.u32 [#allocation10], 4
          %s204 = int_to_ptr.vmem [resolvable:$true] %s203
          %209 = dma.hbm_to_vmem [thread:$0]  %s202, 512, %s204, [#allocation11], 128, 128, 8
        $region24: #{tpu_custom_call.1} parent=11 // pred_fallthru
          _
      $region12: #{tpu_custom_call.1} parent=5 // pred_fallthru
        _
      %p210 = scmp.lt.s32.totalorder %s21, 2
      // Predicated region
      $region25: #{tpu_custom_call.1} parent=5 // pred_check
        %p211 = pneg %p210
      $region26: #{tpu_custom_call.1} parent=5 // pred_check_branch
        %213 = sbr.rel (%p211) target = $region28
      $region27: #{tpu_custom_call.1} parent=5 // pred_region
        // Predicated region
        $region29: #{tpu_custom_call.1} parent=27 // pred_check
          %p214 = pneg %p41
        $region30: #{tpu_custom_call.1} parent=27 // pred_check_branch
          %216 = sbr.rel (%p214) target = $region32
        $region31: #{tpu_custom_call.1} parent=27 // pred_region
          %s217 = sand.u32 %s31, 1
          %s218 = scalar_lea.sflag [#allocation5], %s217
          %s219 = sand.u32 %s31, 1
          %s220 = smul.addr %s219, 32
          %s221 = scalar_lea.vmem [#allocation4], %s220
          %s222 = smul.u32 4, %s21
          %224 = vsyncadd %s218, 0
          %s225 = smul.addr %s222, 8
          %s226 = scalar_lea.hbm %s0, %s225
          %s227 = sshll.u32 %s226, 4
          %s228 = int_to_ptr.hbm [resolvable:$true] %s227
          %s229 = sshll.u32 %s221, 4
          %s230 = int_to_ptr.vmem [resolvable:$true] %s229
          %235 = dma.hbm_to_vmem [thread:$0]  %s228, 512, %s230, %s218, 128, 128, 8
        $region32: #{tpu_custom_call.1} parent=27 // pred_fallthru
          _
      $region28: #{tpu_custom_call.1} parent=5 // pred_fallthru
        _
      %p236 = scmp.le.s32.totalorder 1, %s21
      %p237 = scmp.lt.s32.totalorder %s21, 3
      %p238 = pnand %p236, %p237
      %p239 = pneg %p238
      // Predicated region
      $region33: #{tpu_custom_call.1} parent=5 // pred_check
        _
      $region34: #{tpu_custom_call.1} parent=5 // pred_check_branch
        %241 = sbr.rel (%p238) target = $region36
      $region35: #{tpu_custom_call.1} parent=5 // pred_region
        %s242 = ssub.s32 %s21, 1
        %s243 = sand.u32 %s34, 1
        %s244 = scalar_lea.sflag [#allocation5], %s243
        %s245 = sand.u32 %s34, 1
        %s246 = smul.addr %s245, 32
        %s247 = scalar_lea.vmem [#allocation4], %s246
        // Predicated region
        $region37: #{tpu_custom_call.1} parent=35 // pred_check
          %p248 = pneg %p47
        $region38: #{tpu_custom_call.1} parent=35 // pred_check_branch
          %250 = sbr.rel (%p248) target = $region40
        $region39: #{tpu_custom_call.1} parent=35 // pred_region
          %252 = dma.done %s244, 512
        $region40: #{tpu_custom_call.1} parent=35 // pred_fallthru
          _
        // Predicated region
        $region41: #{tpu_custom_call.1} parent=35 // pred_check
          %p253 = pneg %p68
        $region42: #{tpu_custom_call.1} parent=35 // pred_check_branch
          %255 = sbr.rel (%p253) target = $region44
        $region43: #{tpu_custom_call.1} parent=35 // pred_region
          %257 = dma.done [#allocation8], 128
        $region44: #{tpu_custom_call.1} parent=35 // pred_fallthru
          _
        // Predicated region
        $region45: #{tpu_custom_call.1} parent=35 // pred_check
          %p258 = pneg %p89
        $region46: #{tpu_custom_call.1} parent=35 // pred_check_branch
          %260 = sbr.rel (%p258) target = $region48
        $region47: #{tpu_custom_call.1} parent=35 // pred_region
          %262 = dma.done [#allocation8], 128
        $region48: #{tpu_custom_call.1} parent=35 // pred_fallthru
          _
        // Predicated region
        $region49: #{tpu_custom_call.1} parent=35 // pred_check
          %p263 = pneg %p110
        $region50: #{tpu_custom_call.1} parent=35 // pred_check_branch
          %265 = sbr.rel (%p263) target = $region52
        $region51: #{tpu_custom_call.1} parent=35 // pred_region
          %267 = dma.done [#allocation11], 512
        $region52: #{tpu_custom_call.1} parent=35 // pred_fallthru
          _
        %s268 = sand.u32 %s34, 1
        %s269 = scalar_lea.sflag [#allocation5], %s268
        %s270 = sand.u32 %s34, 1
        %s271 = smul.addr %s270, 32
        %s272 = scalar_lea.vmem [#allocation4], %s271
        %p273 = pneg %p47
        %p274 = pneg %p44
        %p275 = pneg %p68
        %p276 = pneg %p65
        %p277 = pneg %p89
        %p278 = pneg %p86
        %p279 = pneg %p110
        %p280 = pneg %p107
        %p281 = pneg %p136
        %p282 = pneg %p133
        %s283 = sand.u32 %s123, 1
        %s284 = scalar_lea.sflag [#allocation6], %s283
        %s285 = sand.u32 %s123, 1
        %s286 = smul.addr %s285, 32
        %s287 = scalar_lea.vmem [#allocation12], %s286
        %p288 = pneg %p157
        %p289 = pneg %p154
        %s290 = smul.u32 4, %s26
        %s291 = smul.u32 4, %s26
        %p292 = scmp.eq.s32.totalorder %s26, 0
        // Predicated region
        $region53: #{tpu_custom_call.1} parent=35 // pred_check
          %p293 = pneg %p292
        $region54: #{tpu_custom_call.1} parent=35 // pred_check_branch
          %295 = sbr.rel (%p293) target = $region56
        $region55: #{tpu_custom_call.1} parent=35 // pred_region
          %v296 = vld [vmem:[#allocation7] sm:$0xff]
          %vm297 = vcmask 261120
          %298 = vst.msk [vmem:[#allocation2] sm:$0xff] %vm297, %v296
          %v299 = vld [vmem:[#allocation9] sm:$0xff]
          %300 = vst.msk [vmem:[#allocation3] sm:$0xff] %vm297, %v299
        $region56: #{tpu_custom_call.1} parent=35 // pred_fallthru
          _
        %v301 = vld [vmem:[#allocation10] sm:$0xff]
        %v302 = vld [vmem:[#allocation10 + $0x8] sm:$0xff]
        %v303 = vld [vmem:[#allocation10 + $0x10] sm:$0xff]
        %v304 = vld [vmem:[#allocation10 + $0x18] sm:$0xff]
        %v305 = vld [vmem:[#allocation3] sm:$0xff]
        %v306 = vld [vmem:[%s247] sm:$0xff]
        %vm307 = vcmask 261120
        %v309 = vsel %vm307, %v305, 0
        %311 = vmatpush.msra.mxu0 0.0
        %312 = vmatpush.msra.mxu0 0.0
        %313 = vmatpush.msra.mxu0 0.0
        %314 = vmatpush.msra.mxu0 0.0
        %315 = vmatpush.msra.mxu0 0.0
        %316 = vmatpush.msra.mxu0 0.0
        %317 = vmatpush.msra.mxu0 0.0
        %318 = vmatpush.msra.mxu0 0.0
        %319 = vmatpush.msra.mxu0 0.0
        %320 = vmatpush.msra.mxu0 0.0
        %321 = vmatpush.msra.mxu0 0.0
        %322 = vmatpush.msra.mxu0 0.0
        %323 = vmatpush.msra.mxu0 %v304
        %324 = vmatpush.msra.mxu0 %v303
        %325 = vmatpush.msra.mxu0 %v302
        %326 = vmatpush.msra.mxu0 %v301
        %327 = vmatmul.f32.gmra.mxu0 %v309
        %v328 = vpop.f32.mrf.mxu0
        %v329 = vadd.f32 %v306, %v328
        %330 = vdwg.mxu0
        %v331 = vxor.u32 %v329, 2147483648
        %v332 = vmul.f32 %v331, 1.442695
        %v333 = vpow.pop %v332
        %v334 = vadd.f32 %v333, 1.0
        %v335 = vrcp.pop %v334
        %v336 = vmul.f32 %v334, %v335
        %v337 = vsub.f32 1.0, %v336
        %v338 = vmul.f32 %v335, %v337
        %v339 = vadd.f32 %v335, %v338
        %vm340 = vweird.f32 %v334
        %vm341 = vweird.f32 %v335
        %vm342 = vmor %vm340, %vm341
        %v343 = vsel %vm342, %v335, %v339
        %v344 = vand.u32 2147483647, %v334
        %vm345 = vcmp.eq.f32.partialorder %v344, 8.507059e+37
        %v346 = vand.u32 %v334, 2147483648
        %v347 = vor.u32 1.1754944e-38, %v346
        %v348 = vsel %vm345, %v347, %v343
        %v349 = vmul.f32 1.0, %v348
        %v350 = vtanh.pop %v329
        %v351 = vld [vmem:[#allocation2] sm:$0xff]
        %v352 = vmul.f32 %v349, %v351
        %354 = vrot.lane.b32.xlu0 %v350, 64
        %v355 = vpop.permute.xlu0 %354
        %v357 = vmul.f32 %v349, %v355
        %359 = vrot.lane.b32.xlu0 %v357, 96
        %v360 = vpop.permute.xlu0 %359
        %v362 = vadd.f32 %v352, %v360
        %v363 = vtanh.pop %v362
        %365 = vrot.lane.b32.xlu0 %v349, 64
        %v366 = vpop.permute.xlu0 %365
        %v368 = vmul.f32 %v363, %v366
        %369 = vst.msk [vmem:[#allocation2] sm:$0xff] %vm307, %v362
        %370 = vst.msk [vmem:[#allocation3] sm:$0xff] %vm307, %v368
        %371 = vst.msk [vmem:[%s287] sm:$0xff] %vm307, %v368
        %v372 = vld [vmem:[#allocation3] sm:$0xff]
        %s373 = scalar_lea.vmem %s247, 8 [#allocation4]
        %v374 = vld [vmem:[%s373] sm:$0xff]
        %v376 = vsel %vm307, %v372, 0
        %378 = vmatpush.msra.mxu0 0.0
        %379 = vmatpush.msra.mxu0 0.0
        %380 = vmatpush.msra.mxu0 0.0
        %381 = vmatpush.msra.mxu0 0.0
        %382 = vmatpush.msra.mxu0 0.0
        %383 = vmatpush.msra.mxu0 0.0
        %384 = vmatpush.msra.mxu0 0.0
        %385 = vmatpush.msra.mxu0 0.0
        %386 = vmatpush.msra.mxu0 0.0
        %387 = vmatpush.msra.mxu0 0.0
        %388 = vmatpush.msra.mxu0 0.0
        %389 = vmatpush.msra.mxu0 0.0
        %390 = vmatpush.msra.mxu0 %v304
        %391 = vmatpush.msra.mxu0 %v303
        %392 = vmatpush.msra.mxu0 %v302
        %393 = vmatpush.msra.mxu0 %v301
        %394 = vmatmul.f32.gmra.mxu0 %v376
        %v395 = vpop.f32.mrf.mxu0
        %v396 = vadd.f32 %v374, %v395
        %397 = vdwg.mxu0
        %v398 = vxor.u32 %v396, 2147483648
        %v399 = vmul.f32 %v398, 1.442695
        %v400 = vpow.pop %v399
        %v401 = vadd.f32 %v400, 1.0
        %v402 = vrcp.pop %v401
        %v403 = vmul.f32 %v401, %v402
        %v404 = vsub.f32 1.0, %v403
        %v405 = vmul.f32 %v402, %v404
        %v406 = vadd.f32 %v402, %v405
        %vm407 = vweird.f32 %v401
        %vm408 = vweird.f32 %v402
        %vm409 = vmor %vm407, %vm408
        %v410 = vsel %vm409, %v402, %v406
        %v411 = vand.u32 2147483647, %v401
        %vm412 = vcmp.eq.f32.partialorder %v411, 8.507059e+37
        %v413 = vand.u32 %v401, 2147483648
        %v414 = vor.u32 1.1754944e-38, %v413
        %v415 = vsel %vm412, %v414, %v410
        %v416 = vmul.f32 1.0, %v415
        %v417 = vtanh.pop %v396
        %v418 = vld [vmem:[#allocation2] sm:$0xff]
        %v419 = vmul.f32 %v416, %v418
        %421 = vrot.lane.b32.xlu0 %v417, 64
        %v422 = vpop.permute.xlu0 %421
        %v424 = vmul.f32 %v416, %v422
        %426 = vrot.lane.b32.xlu0 %v424, 96
        %v427 = vpop.permute.xlu0 %426
        %v429 = vadd.f32 %v419, %v427
        %v430 = vtanh.pop %v429
        %432 = vrot.lane.b32.xlu0 %v416, 64
        %v433 = vpop.permute.xlu0 %432
        %v435 = vmul.f32 %v430, %v433
        %436 = vst.msk [vmem:[#allocation2] sm:$0xff] %vm307, %v429
        %437 = vst.msk [vmem:[#allocation3] sm:$0xff] %vm307, %v435
        %s438 = scalar_lea.vmem %s287, 8 [#allocation12]
        %439 = vst.msk [vmem:[%s438] sm:$0xff] %vm307, %v435
        %v440 = vld [vmem:[#allocation3] sm:$0xff]
        %s441 = scalar_lea.vmem %s247, 16 [#allocation4]
        %v442 = vld [vmem:[%s441] sm:$0xff]
        %v444 = vsel %vm307, %v440, 0
        %446 = vmatpush.msra.mxu0 0.0
        %447 = vmatpush.msra.mxu0 0.0
        %448 = vmatpush.msra.mxu0 0.0
        %449 = vmatpush.msra.mxu0 0.0
        %450 = vmatpush.msra.mxu0 0.0
        %451 = vmatpush.msra.mxu0 0.0
        %452 = vmatpush.msra.mxu0 0.0
        %453 = vmatpush.msra.mxu0 0.0
        %454 = vmatpush.msra.mxu0 0.0
        %455 = vmatpush.msra.mxu0 0.0
        %456 = vmatpush.msra.mxu0 0.0
        %457 = vmatpush.msra.mxu0 0.0
        %458 = vmatpush.msra.mxu0 %v304
        %459 = vmatpush.msra.mxu0 %v303
        %460 = vmatpush.msra.mxu0 %v302
        %461 = vmatpush.msra.mxu0 %v301
        %462 = vmatmul.f32.gmra.mxu0 %v444
        %v463 = vpop.f32.mrf.mxu0
        %v464 = vadd.f32 %v442, %v463
        %465 = vdwg.mxu0
        %v466 = vxor.u32 %v464, 2147483648
        %v467 = vmul.f32 %v466, 1.442695
        %v468 = vpow.pop %v467
        %v469 = vadd.f32 %v468, 1.0
        %v470 = vrcp.pop %v469
        %v471 = vmul.f32 %v469, %v470
        %v472 = vsub.f32 1.0, %v471
        %v473 = vmul.f32 %v470, %v472
        %v474 = vadd.f32 %v470, %v473
        %vm475 = vweird.f32 %v469
        %vm476 = vweird.f32 %v470
        %vm477 = vmor %vm475, %vm476
        %v478 = vsel %vm477, %v470, %v474
        %v479 = vand.u32 2147483647, %v469
        %vm480 = vcmp.eq.f32.partialorder %v479, 8.507059e+37
        %v481 = vand.u32 %v469, 2147483648
        %v482 = vor.u32 1.1754944e-38, %v481
        %v483 = vsel %vm480, %v482, %v478
        %v484 = vmul.f32 1.0, %v483
        %v485 = vtanh.pop %v464
        %v486 = vld [vmem:[#allocation2] sm:$0xff]
        %v487 = vmul.f32 %v484, %v486
        %489 = vrot.lane.b32.xlu0 %v485, 64
        %v490 = vpop.permute.xlu0 %489
        %v492 = vmul.f32 %v484, %v490
        %494 = vrot.lane.b32.xlu0 %v492, 96
        %v495 = vpop.permute.xlu0 %494
        %v497 = vadd.f32 %v487, %v495
        %v498 = vtanh.pop %v497
        %500 = vrot.lane.b32.xlu0 %v484, 64
        %v501 = vpop.permute.xlu0 %500
        %v503 = vmul.f32 %v498, %v501
        %504 = vst.msk [vmem:[#allocation2] sm:$0xff] %vm307, %v497
        %505 = vst.msk [vmem:[#allocation3] sm:$0xff] %vm307, %v503
        %s506 = scalar_lea.vmem %s287, 16 [#allocation12]
        %507 = vst.msk [vmem:[%s506] sm:$0xff] %vm307, %v503
        %v508 = vld [vmem:[#allocation3] sm:$0xff]
        %s509 = scalar_lea.vmem %s247, 24 [#allocation4]
        %v510 = vld [vmem:[%s509] sm:$0xff]
        %v512 = vsel %vm307, %v508, 0
        %514 = vmatpush.msra.mxu0 0.0
        %515 = vmatpush.msra.mxu0 0.0
        %516 = vmatpush.msra.mxu0 0.0
        %517 = vmatpush.msra.mxu0 0.0
        %518 = vmatpush.msra.mxu0 0.0
        %519 = vmatpush.msra.mxu0 0.0
        %520 = vmatpush.msra.mxu0 0.0
        %521 = vmatpush.msra.mxu0 0.0
        %522 = vmatpush.msra.mxu0 0.0
        %523 = vmatpush.msra.mxu0 0.0
        %524 = vmatpush.msra.mxu0 0.0
        %525 = vmatpush.msra.mxu0 0.0
        %526 = vmatpush.msra.mxu0 %v304
        %527 = vmatpush.msra.mxu0 %v303
        %528 = vmatpush.msra.mxu0 %v302
        %529 = vmatpush.msra.mxu0 %v301
        %530 = vmatmul.f32.gmra.mxu0 %v512
        %v531 = vpop.f32.mrf.mxu0
        %v532 = vadd.f32 %v510, %v531
        %533 = vdwg.mxu0
        %v534 = vxor.u32 %v532, 2147483648
        %v535 = vmul.f32 %v534, 1.442695
        %v536 = vpow.pop %v535
        %v537 = vadd.f32 %v536, 1.0
        %v538 = vrcp.pop %v537
        %v539 = vmul.f32 %v537, %v538
        %v540 = vsub.f32 1.0, %v539
        %v541 = vmul.f32 %v538, %v540
        %v542 = vadd.f32 %v538, %v541
        %vm543 = vweird.f32 %v537
        %vm544 = vweird.f32 %v538
        %vm545 = vmor %vm543, %vm544
        %v546 = vsel %vm545, %v538, %v542
        %v547 = vand.u32 2147483647, %v537
        %vm548 = vcmp.eq.f32.partialorder %v547, 8.507059e+37
        %v549 = vand.u32 %v537, 2147483648
        %v550 = vor.u32 1.1754944e-38, %v549
        %v551 = vsel %vm548, %v550, %v546
        %v552 = vmul.f32 1.0, %v551
        %v553 = vtanh.pop %v532
        %v554 = vld [vmem:[#allocation2] sm:$0xff]
        %v555 = vmul.f32 %v552, %v554
        %557 = vrot.lane.b32.xlu0 %v553, 64
        %v558 = vpop.permute.xlu0 %557
        %v560 = vmul.f32 %v552, %v558
        %562 = vrot.lane.b32.xlu0 %v560, 96
        %v563 = vpop.permute.xlu0 %562
        %v565 = vadd.f32 %v555, %v563
        %v566 = vtanh.pop %v565
        %568 = vrot.lane.b32.xlu0 %v552, 64
        %v569 = vpop.permute.xlu0 %568
        %v571 = vmul.f32 %v566, %v569
        %572 = vst.msk [vmem:[#allocation2] sm:$0xff] %vm307, %v565
        %573 = vst.msk [vmem:[#allocation3] sm:$0xff] %vm307, %v571
        %s574 = scalar_lea.vmem %s287, 24 [#allocation12]
        %575 = vst.msk [vmem:[%s574] sm:$0xff] %vm307, %v571
        %p576 = scmp.eq.s32.totalorder %s26, 1
        // Predicated region
        $region57: #{tpu_custom_call.1} parent=35 // pred_check
          %p577 = pneg %p576
        $region58: #{tpu_custom_call.1} parent=35 // pred_check_branch
          %579 = sbr.rel (%p577) target = $region60
        $region59: #{tpu_custom_call.1} parent=35 // pred_region
          %v580 = vld [vmem:[#allocation2] sm:$0xff]
          %581 = vst.msk [vmem:[#allocation13] sm:$0xff] %vm307, %v580
        $region60: #{tpu_custom_call.1} parent=35 // pred_fallthru
          _
        %s582 = sand.u32 %s123, 1
        %s583 = scalar_lea.sflag [#allocation6], %s582
        %s584 = sand.u32 %s123, 1
        %s585 = smul.addr %s584, 32
        %s586 = scalar_lea.vmem [#allocation12], %s585
        // Predicated region
        $region61: #{tpu_custom_call.1} parent=35 // pred_check
          %p587 = pneg %p133
        $region62: #{tpu_custom_call.1} parent=35 // pred_check_branch
          %589 = sbr.rel (%p587) target = $region64
        $region63: #{tpu_custom_call.1} parent=35 // pred_region
          %s590 = smul.u32 4, %s26
          %592 = vsyncadd %s583, 0
          %s593 = smul.addr %s590, 8
          %s594 = scalar_lea.hbm %s4, %s593
          %s595 = sshll.u32 %s586, 4
          %s596 = int_to_ptr.vmem [resolvable:$true] %s595
          %s597 = sshll.u32 %s594, 4
          %s598 = int_to_ptr.hbm [resolvable:$true] %s597
          %603 = dma.vmem_to_hbm [thread:$0]  %s596, 512, %s598, %s583, 128, 128, 8
        $region64: #{tpu_custom_call.1} parent=35 // pred_fallthru
          _
        // Predicated region
        $region65: #{tpu_custom_call.1} parent=35 // pred_check
          %p604 = pneg %p154
        $region66: #{tpu_custom_call.1} parent=35 // pred_check_branch
          %606 = sbr.rel (%p604) target = $region68
        $region67: #{tpu_custom_call.1} parent=35 // pred_region
          %608 = vsyncadd [#allocation14], 0
          %s610 = sshll.u32 [#allocation13], 4
          %s611 = int_to_ptr.vmem [resolvable:$true] %s610
          %s612 = sshll.u32 %s5, 4
          %s613 = int_to_ptr.hbm [resolvable:$true] %s612
          %615 = dma.vmem_to_hbm [thread:$0]  %s611, 128, %s613, [#allocation14]
        $region68: #{tpu_custom_call.1} parent=35 // pred_fallthru
          _
        // Predicated region
        $region69: #{tpu_custom_call.1} parent=35 // pred_check
          %p616 = pneg %p154
        $region70: #{tpu_custom_call.1} parent=35 // pred_check_branch
          %618 = sbr.rel (%p616) target = $region72
        $region71: #{tpu_custom_call.1} parent=35 // pred_region
          %620 = dma.done [#allocation14], 128
        $region72: #{tpu_custom_call.1} parent=35 // pred_fallthru
          _
      $region36: #{tpu_custom_call.1} parent=5 // pred_fallthru
        _
      %p621 = scmp.le.s32.totalorder 2, %s21
      // Predicated region
      $region73: #{tpu_custom_call.1} parent=5 // pred_check
        %p622 = pneg %p621
      $region74: #{tpu_custom_call.1} parent=5 // pred_check_branch
        %624 = sbr.rel (%p622) target = $region76
      $region75: #{tpu_custom_call.1} parent=5 // pred_region
        %s625 = ssub.s32 %s21, 2
        // Predicated region
        $region77: #{tpu_custom_call.1} parent=75 // pred_check
          %p626 = pneg %p139
        $region78: #{tpu_custom_call.1} parent=75 // pred_check_branch
          %628 = sbr.rel (%p626) target = $region80
        $region79: #{tpu_custom_call.1} parent=75 // pred_region
          %s629 = sand.u32 %s124, 1
          %s630 = scalar_lea.sflag [#allocation6], %s629
          %s631 = sand.u32 %s124, 1
          %s632 = smul.addr %s631, 32
          %s633 = scalar_lea.vmem [#allocation12], %s632
          %635 = dma.done %s630, 512
        $region80: #{tpu_custom_call.1} parent=75 // pred_fallthru
          _
      $region76: #{tpu_custom_call.1} parent=5 // pred_fallthru
        _
    $region6: #{tpu_custom_call.1} parent=1 // loop_footer
      %s25 = sadd.s32 1, %s21
    $region7: #{tpu_custom_call.1} parent=1 // loop_footer_branch
      %20 = sbr.rel target = $region3
    $region8: #{tpu_custom_call.1} parent=1 // loop_exit
      _
    %636 = vsyncpa [#allocation5], 1
    %s637 = scalar_lea.sflag [#allocation5], 1
    %638 = vsyncpa %s637, 1
    %639 = vsyncpa [#allocation8], 1
    %640 = vsyncpa [#allocation11], 1
    %641 = vsyncpa [#allocation6], 1
    %s642 = scalar_lea.sflag [#allocation6], 1
    %643 = vsyncpa %s642, 1
    %644 = vsyncpa [#allocation14], 1

</llo_original>
